<compile_context>
chip_gen: v7x
topology: tpu7x:2x2x1
jax: 0.10.0
libtpu: 0.0.40
codegen_flags: <defaults>
</compile_context>

<pallas_src>
import functools

import jax
import jax.numpy as jnp
from jax.experimental import pallas as pl
from jax.experimental.pallas import tpu as pltpu

hwgq_steps = {1: 0.799, 2: 0.538, 3: 0.3217, 4: 0.185,
              5: 0.185, 6: 0.185, 7: 0.185, 8: 0.185}

LANE = 128


def _round_up(a, b):
    return ((a + b - 1) // b) * b


def _mix_quant_activ_kernel(w_ref, x_ref, o_ref, *, bits):
    """Elementwise mixed HWGQ quantization.

    w_ref : SMEM, shape (len(bits),) f32 -- per-branch scalar:
              sw[i] * step_i   for bit < 32   (step folded into weight)
              sw[i]            for bit >= 32
    x_ref : VMEM tile (tr, 128)
    o_ref : VMEM tile (tr, 128)
    """
    # Explicit f32 compute dtype; one upcast on load, one downcast on store.
    x = x_ref[...].astype(jnp.float32)
    # Shared ReLU for every branch (each HWGQ branch clamps at 0 first).
    x0 = jnp.maximum(x, 0.0)

    # Scale x0 once per *distinct* step (bits 4..8 share step 0.185).
    distinct_steps = []
    for bit in bits:
        if bit < 32 and hwgq_steps[bit] not in distinct_steps:
            distinct_steps.append(hwgq_steps[bit])
    xs_by_step = {step: x0 * (1.0 / step) for step in distinct_steps}

    acc = None
    # `bits` is static config -> unrolled Python loop, constants baked in.
    for i, bit in enumerate(bits):
        w = w_ref[i]  # single scalar read + one scalar->vreg broadcast per branch
        if bit >= 32:
            term = x0 * w
        else:
            step = hwgq_steps[bit]
            lvls = float(2 ** bit - 1)
            # Clamp in the scaled domain: min(x0/step, lvls) == min(x0, step*lvls)/step
            q = jnp.round(jnp.minimum(xs_by_step[step], lvls))
            term = q * w                                # w = sw[i] * step
        acc = term if acc is None else acc + term

    o_ref[...] = acc.astype(o_ref.dtype)


def mix_quant_activ(x, alpha_activ, bits, *, tile_bytes=2 << 20):
    """JAX wrapper: softmax/weight-folding as glue, elementwise hot path in Pallas."""
    bits = tuple(bits)
    for b in bits:
        assert b >= 32 or b in hwgq_steps, f"unsupported HWGQ bit width: {b}"

    orig_shape = x.shape
    orig_dtype = x.dtype
    n = x.size
    itemsize = jnp.dtype(orig_dtype).itemsize

    rows = pl.cdiv(n, LANE)
    # Sublane granularity: 8 for 4-byte dtypes, 16 for 2-byte (bf16 packing).
    sub = 16 if itemsize == 2 else 8

    # Target ~2 MiB tiles (HBM-roofline streaming), but
    #   - keep >= ~16 grid steps so v7x's two TensorCores both get work,
    #   - never exceed the (sublane-rounded) array itself.
    target_rows = max(sub, tile_bytes // (LANE * itemsize))
    tr = min(_round_up(target_rows, sub),
             _round_up(pl.cdiv(rows, 16), sub),
             _round_up(rows, sub))
    tr = max(sub, tr)

    # Only pad for ragged sizes (numel not a multiple of 128); <=127 extra elems.
    padded = (n % LANE) != 0
    flat = x.reshape(-1)
    if padded:
        flat = jnp.pad(flat, (0, rows * LANE - n))   # HWGQ(0) == 0, discarded anyway
    x2d = flat.reshape(rows, LANE)                   # free view for aligned sizes

    sw = jax.nn.softmax(alpha_activ.astype(jnp.float32), axis=0)
    # Fold the quantization step into the branch weight (scalar work stays in XLA).
    scale = jnp.asarray(
        [hwgq_steps[b] if b < 32 else 1.0 for b in bits], dtype=jnp.float32)
    wscaled = sw * scale

    grid = (pl.cdiv(rows, tr),)
    tile_nbytes = tr * LANE * itemsize
    # Double-buffered in + out (~4 tiles) plus headroom; never below the 16 MiB
    # v5e scoped default, never near the v7x 64 MiB physical limit.
    vmem_bytes = min(max(4 * tile_nbytes + (4 << 20), 16 << 20), 56 << 20)

    out2d = pl.pallas_call(
        functools.partial(_mix_quant_activ_kernel, bits=bits),
        out_shape=jax.ShapeDtypeStruct((rows, LANE), orig_dtype),
        grid=grid,
        in_specs=[
            pl.BlockSpec(memory_space=pltpu.SMEM),            # per-branch scalars
            pl.BlockSpec((tr, LANE), lambda i: (i, 0)),       # x tile (partial last block masked)
        ],
        out_specs=pl.BlockSpec((tr, LANE), lambda i: (i, 0)),
        compiler_params=pltpu.CompilerParams(
            dimension_semantics=("parallel",),                # megacore sharding on v7x
            vmem_limit_bytes=vmem_bytes,
        ),
        cost_estimate=pl.CostEstimate(
            flops=5 * len(bits) * n,
            transcendentals=0,
            bytes_accessed=2 * itemsize * n,
        ),
    )(wscaled, x2d)

    out_flat = out2d.reshape(-1)
    if padded:
        out_flat = out_flat[:n]
    return out_flat.reshape(orig_shape)


def _reference(x, alpha_activ, bits):
    """Pure-JAX reference mirroring the PyTorch forward exactly."""
    xf = x.astype(jnp.float32)
    sw = jax.nn.softmax(alpha_activ.astype(jnp.float32), axis=0)
    acc = jnp.zeros_like(xf)
    for i, bit in enumerate(bits):
        if bit >= 32:
            y = jnp.maximum(xf, 0.0)
        else:
            step = hwgq_steps[bit]
            clip_thr = step * float(2 ** bit - 1)
            y = jnp.clip(xf, 0.0, clip_thr)
            y = jnp.round(y / step) * step
        acc = acc + y * sw[i]
    return acc.astype(x.dtype)


if __name__ == "__main__":
    key = jax.random.PRNGKey(0)

    # --- case 1: NCHW conv-style activation, numel multiple of 128 (no-copy path) ---
    bits = (1, 2, 4)
    alpha_activ = jnp.full((len(bits),), 0.01, dtype=jnp.float32)  # .fill_(0.01)
    k1, k2 = jax.random.split(key)
    x = jax.random.normal(k1, (2, 4, 16, 16), dtype=jnp.float32)

    out = jax.block_until_ready(mix_quant_activ(x, alpha_activ, bits))
    ref = _reference(x, alpha_activ, bits)
    assert out.shape == x.shape and out.dtype == x.dtype
    assert jnp.allclose(out, ref, atol=1e-5, rtol=1e-5), "mismatch vs reference (case 1)"

    # --- case 2: ragged size (exercises pad + partial-block path) + float branch,
    #             plus two branches sharing step 0.185 (shared-xs path) ---
    bits2 = (2, 4, 5, 32)
    alpha2 = jnp.full((len(bits2),), 0.01, dtype=jnp.float32)
    x2 = jax.random.normal(k2, (3, 5, 7, 11), dtype=jnp.float32)

    out2 = jax.block_until_ready(mix_quant_activ(x2, alpha2, bits2))
    ref2 = _reference(x2, alpha2, bits2)
    assert out2.shape == x2.shape and out2.dtype == x2.dtype
    assert jnp.allclose(out2, ref2, atol=1e-5, rtol=1e-5), "mismatch vs reference (case 2)"

    print("KERNEL_OK")
</pallas_src>

<mosaic_0001>
module attributes {stable_mosaic.version = 11 : i64} {
  func.func @_mix_quant_activ_kernel(%arg0: i32, %arg1: memref<3xf32, #tpu.memory_space<smem>>, %arg2: memref<8x128xf32, #tpu.memory_space<vmem>>, %arg3: memref<8x128xf32, #tpu.memory_space<vmem>>) attributes {dimension_semantics = [#tpu.dimension_semantics<parallel>], iteration_bounds = array<i64: 2>, scalar_prefetch = 0 : i64, scratch_operands = 0 : i64, tpu.core_type = #tpu.core_type<tc>, window_params = [{transform_indices = @transform_0, window_bounds = array<i64: 3>}, {transform_indices = @transform_1, window_bounds = array<i64: 8, 128>}, {transform_indices = @transform_2, window_bounds = array<i64: 8, 128>}]} {
    %c0 = arith.constant 0 : index
    %c0_0 = arith.constant 0 : index
    %0 = vector.load %arg2[%c0, %c0_0] : memref<8x128xf32, #tpu.memory_space<vmem>>, vector<8x128xf32>
    %cst = arith.constant 0.000000e+00 : f32
    %1 = vector.broadcast %cst : f32 to vector<8x128xf32>
    %2 = arith.maximumf %0, %1 : vector<8x128xf32>
    %cst_1 = arith.constant 1.2515645 : f32
    %3 = vector.broadcast %cst_1 : f32 to vector<8x128xf32>
    %4 = arith.mulf %2, %3 : vector<8x128xf32>
    %cst_2 = arith.constant 1.85873604 : f32
    %5 = vector.broadcast %cst_2 : f32 to vector<8x128xf32>
    %6 = arith.mulf %2, %5 : vector<8x128xf32>
    %cst_3 = arith.constant 5.40540552 : f32
    %7 = vector.broadcast %cst_3 : f32 to vector<8x128xf32>
    %8 = arith.mulf %2, %7 : vector<8x128xf32>
    %c0_4 = arith.constant 0 : index
    %9 = memref.load %arg1[%c0_4] : memref<3xf32, #tpu.memory_space<smem>>
    %cst_5 = arith.constant 1.000000e+00 : f32
    %10 = vector.broadcast %cst_5 : f32 to vector<8x128xf32>
    %11 = arith.minimumf %4, %10 : vector<8x128xf32>
    %12 = math.roundeven %11 : vector<8x128xf32>
    %13 = vector.broadcast %9 : f32 to vector<8x128xf32>
    %14 = arith.mulf %12, %13 : vector<8x128xf32>
    %c1 = arith.constant 1 : index
    %15 = memref.load %arg1[%c1] : memref<3xf32, #tpu.memory_space<smem>>
    %cst_6 = arith.constant 3.000000e+00 : f32
    %16 = vector.broadcast %cst_6 : f32 to vector<8x128xf32>
    %17 = arith.minimumf %6, %16 : vector<8x128xf32>
    %18 = math.roundeven %17 : vector<8x128xf32>
    %19 = vector.broadcast %15 : f32 to vector<8x128xf32>
    %20 = arith.mulf %18, %19 : vector<8x128xf32>
    %21 = arith.addf %14, %20 : vector<8x128xf32>
    %c2 = arith.constant 2 : index
    %22 = memref.load %arg1[%c2] : memref<3xf32, #tpu.memory_space<smem>>
    %cst_7 = arith.constant 1.500000e+01 : f32
    %23 = vector.broadcast %cst_7 : f32 to vector<8x128xf32>
    %24 = arith.minimumf %8, %23 : vector<8x128xf32>
    %25 = math.roundeven %24 : vector<8x128xf32>
    %26 = vector.broadcast %22 : f32 to vector<8x128xf32>
    %27 = arith.mulf %25, %26 : vector<8x128xf32>
    %28 = arith.addf %21, %27 : vector<8x128xf32>
    %c0_8 = arith.constant 0 : index
    %c0_9 = arith.constant 0 : index
    %29 = vector.load %arg3[%c0_8, %c0_9] : memref<8x128xf32, #tpu.memory_space<vmem>>, vector<8x128xf32>
    tpu.vector_store %arg3[%c0_8, %c0_9], %28 {strides = array<i32>} : memref<8x128xf32, #tpu.memory_space<vmem>>, vector<8x128xf32>,
    return
  }
  func.func @transform_0(%arg0: i32) -> i32 {
    %c0_i32 = arith.constant 0 : i32
    %c0_i32_0 = arith.constant 0 : i32
    return %c0_i32 : i32
  }
  func.func @transform_1(%arg0: i32) -> (i32, i32) {
    %c0_i32 = arith.constant 0 : i32
    %c0_i32_0 = arith.constant 0 : i32
    return %arg0, %c0_i32 : i32, i32
  }
  func.func @transform_2(%arg0: i32) -> (i32, i32) {
    %c0_i32 = arith.constant 0 : i32
    %c0_i32_0 = arith.constant 0 : i32
    return %arg0, %c0_i32 : i32, i32
  }
}

</mosaic_0001>

<llo_original>
// kernel: tpu_custom_call.1
$region0: #{tpu_custom_call.1}
  #allocation0 [shape = 'u32[]', space=smem, size = 0x4, offset = 0x4, fixed_abs, tag = 'smem constant byte address 0x4 - core index']
  #allocation1 [shape = 'u32[144,128]{1,0:T(1,128)}', space=vmem, size = 0x12000, scoped, tag = 'internal scratch']
  %s0 = inlined_call_operand.hbm [shape: f32[3], index: 0, kind: input, shape index: {}]
  %s1 = inlined_call_operand.hbm [shape: f32[16,128], index: 1, kind: input, shape index: {}]
  %s2 = inlined_call_operand.hbm [shape: f32[16,128], index: 2, kind: output, shape index: {}]
  %s3 = sld [smem:[#allocation0]]
  $region49: #{tpu_custom_call.1} parent=0
    _
  %s5 = ssub.s32 1, %s3
  %s6 = scalar_select 0, %s5, %s3
  $region1: #{tpu_custom_call.1} parent=0
    #allocation2 [shape = 'u8[512]{0}', space=smem, size = 0x200, scoped, tag = 'input window, operand 0, single buffered']
    #allocation3 [shape = 's32[2]{0}', space=sflag, size = 0x8, scoped, tag = 'scoped memory for tpu_custom_call.1']
    #allocation4 [shape = 's32[2]{0}', space=sflag, size = 0x8, scoped, tag = 'scoped memory for tpu_custom_call.1']
    #allocation5 [shape = 's32[2]{0}', space=sflag, size = 0x8, scoped, tag = 'scoped memory for tpu_custom_call.1']
    #allocation6 [shape = 'u8[8192]{0}', space=vmem, size = 0x2000, scoped, tag = 'input window, operand 1']
    #allocation7 [shape = 'u8[8192]{0}', space=vmem, size = 0x2000, scoped, tag = 'output window, operand 0']
    %7 = vsyncpa [#allocation5], 0
    %8 = vsyncpa [#allocation3], 0
    %s9 = scalar_lea.sflag [#allocation3], 1
    %10 = vsyncpa %s9, 0
    %11 = vsyncpa [#allocation4], 0
    %s12 = scalar_lea.sflag [#allocation4], 1
    %13 = vsyncpa %s12, 0
    loop: start=0, step=1, limit=4
    $region2: #{tpu_custom_call.1} parent=1 // loop_pre_header
      _
    $region3: #{tpu_custom_call.1} parent=1 // loop_header
      %s15 = sphi 0, %s19
      %p16 = scmp.ge.s32.totalorder %s15, 4
      %s23 = sphi 0, %s23
      %s25 = sphi 0, %s23
      %s26 = sphi 0, %s25
      %s40 = sphi 0, %s26
      %s46 = sphi 0, %s48
      %s49 = sphi 0, %s46
      %s50 = sphi 0, %s49
      %s66 = sphi 0, %s50
      %s72 = sphi 0, %s74
      %s75 = sphi 0, %s72
      %s76 = sphi 0, %s75
      %s92 = sphi 0, %s76
    $region4: #{tpu_custom_call.1} parent=1 // loop_header_branch
      %18 = sbr.rel (%p16) target = $region8
    $region5: #{tpu_custom_call.1} parent=1 // loop_body
      %s20 = ssub.s32 %s15, 1
      %s21 = ssub.s32 %s15, 2
      %s22 = sadd.s32 %s15, 1
      %s24 = sadd.s32 %s23, 1
      %p27 = scmp.eq.s32.totalorder %s15, 1
      %p28 = scmp.ne.s32.totalorder %s23, %s25
      %p29 = scmp.eq.s32.totalorder %s15, 0
      %p30 = por %p28, %p29
      %p31 = scmp.ne.s32.totalorder %s23, %s25
      %p32 = scmp.eq.s32.totalorder %s20, 1
      %p33 = por %p31, %p32
      %p34 = scmp.ne.s32.totalorder %s25, %s26
      %p35 = scmp.eq.s32.totalorder %s20, 0
      %p36 = por %p34, %p35
      %p37 = scmp.ne.s32.totalorder %s25, %s26
      %p38 = scmp.eq.s32.totalorder %s21, 1
      %p39 = por %p37, %p38
      %p41 = scmp.ne.s32.totalorder %s26, %s40
      %p42 = scmp.eq.s32.totalorder %s21, 0
      %p43 = por %p41, %p42
      %s44 = ssub.s32 %s15, %s22
      %p45 = scmp.eq.s32.totalorder %s44, 0
      %s47 = sadd.s32 %s46, 1
      %s48 = scalar_select %p45, %s46, %s47
      %p51 = pneg %p45
      %p52 = scmp.eq.s32.totalorder %s15, 1
      %p53 = por %p51, %p52
      %p54 = scmp.ne.s32.totalorder %s46, %s49
      %p55 = scmp.eq.s32.totalorder %s15, 0
      %p56 = por %p54, %p55
      %p57 = scmp.ne.s32.totalorder %s46, %s49
      %p58 = scmp.eq.s32.totalorder %s20, 1
      %p59 = por %p57, %p58
      %p60 = scmp.ne.s32.totalorder %s49, %s50
      %p61 = scmp.eq.s32.totalorder %s20, 0
      %p62 = por %p60, %p61
      %p63 = scmp.ne.s32.totalorder %s49, %s50
      %p64 = scmp.eq.s32.totalorder %s21, 1
      %p65 = por %p63, %p64
      %p67 = scmp.ne.s32.totalorder %s50, %s66
      %p68 = scmp.eq.s32.totalorder %s21, 0
      %p69 = por %p67, %p68
      %s70 = ssub.s32 %s15, %s22
      %p71 = scmp.eq.s32.totalorder %s70, 0
      %s73 = sadd.s32 %s72, 1
      %s74 = scalar_select %p71, %s72, %s73
      %p77 = pneg %p71
      %p78 = scmp.eq.s32.totalorder %s15, 1
      %p79 = por %p77, %p78
      %p80 = scmp.ne.s32.totalorder %s72, %s75
      %p81 = scmp.eq.s32.totalorder %s15, 0
      %p82 = por %p80, %p81
      %p83 = scmp.ne.s32.totalorder %s72, %s75
      %p84 = scmp.eq.s32.totalorder %s20, 1
      %p85 = por %p83, %p84
      %p86 = scmp.ne.s32.totalorder %s75, %s76
      %p87 = scmp.eq.s32.totalorder %s20, 0
      %p88 = por %p86, %p87
      %p89 = scmp.ne.s32.totalorder %s75, %s76
      %p90 = scmp.eq.s32.totalorder %s21, 1
      %p91 = por %p89, %p90
      %p93 = scmp.ne.s32.totalorder %s76, %s92
      %p94 = scmp.eq.s32.totalorder %s21, 0
      %p95 = por %p93, %p94
      %p96 = scmp.le.s32.totalorder 1, %s15
      %p97 = scmp.lt.s32.totalorder %s15, 3
      %p98 = pnand %p96, %p97
      %p99 = pneg %p98
      // Predicated region
      $region9: #{tpu_custom_call.1} parent=5 // pred_check
        _
      $region10: #{tpu_custom_call.1} parent=5 // pred_check_branch
        %101 = sbr.rel (%p98) target = $region12
      $region11: #{tpu_custom_call.1} parent=5 // pred_region
        %s102 = ssub.s32 %s15, 1
        // Predicated region
        $region13: #{tpu_custom_call.1} parent=11 // pred_check
          %p103 = pneg %p36
        $region14: #{tpu_custom_call.1} parent=11 // pred_check_branch
          %105 = sbr.rel (%p103) target = $region16
        $region15: #{tpu_custom_call.1} parent=11 // pred_region
          %s107 = ssub.s32 16, 16
          %108 = vsyncadd [#allocation5], %s107
          %111 = dma.hbm_to_smem %s0, 16, [#allocation2], [#allocation5]
        $region16: #{tpu_custom_call.1} parent=11 // pred_fallthru
          _
      $region12: #{tpu_custom_call.1} parent=5 // pred_fallthru
        _
      %p112 = scmp.lt.s32.totalorder %s15, 2
      // Predicated region
      $region17: #{tpu_custom_call.1} parent=5 // pred_check
        %p113 = pneg %p112
      $region18: #{tpu_custom_call.1} parent=5 // pred_check_branch
        %115 = sbr.rel (%p113) target = $region20
      $region19: #{tpu_custom_call.1} parent=5 // pred_region
        // Predicated region
        $region21: #{tpu_custom_call.1} parent=19 // pred_check
          %p116 = pneg %p56
        $region22: #{tpu_custom_call.1} parent=19 // pred_check_branch
          %118 = sbr.rel (%p116) target = $region24
        $region23: #{tpu_custom_call.1} parent=19 // pred_region
          %s119 = sand.u32 %s46, 1
          %s120 = scalar_lea.sflag [#allocation3], %s119
          %s121 = sand.u32 %s46, 1
          %s122 = smul.addr %s121, 8
          %s123 = scalar_lea.vmem [#allocation6], %s122
          %s125 = ssub.s32 128, 128
          %126 = vsyncadd %s120, %s125
          %s127 = smul.addr %s15, 128
          %s128 = scalar_lea.hbm %s1, %s127
          %s130 = sshll.u32 %s123, 4
          %s131 = int_to_ptr.vmem [resolvable:$true] %s130
          %133 = dma.hbm_to_vmem [thread:$0]  %s128, 128, %s131, %s120
        $region24: #{tpu_custom_call.1} parent=19 // pred_fallthru
          _
      $region20: #{tpu_custom_call.1} parent=5 // pred_fallthru
        _
      %p134 = scmp.le.s32.totalorder 1, %s15
      %p135 = scmp.lt.s32.totalorder %s15, 3
      %p136 = pnand %p134, %p135
      %p137 = pneg %p136
      // Predicated region
      $region25: #{tpu_custom_call.1} parent=5 // pred_check
        _
      $region26: #{tpu_custom_call.1} parent=5 // pred_check_branch
        %139 = sbr.rel (%p136) target = $region28
      $region27: #{tpu_custom_call.1} parent=5 // pred_region
        %s140 = ssub.s32 %s15, 1
        // Predicated region
        $region29: #{tpu_custom_call.1} parent=27 // pred_check
          %p141 = pneg %p36
        $region30: #{tpu_custom_call.1} parent=27 // pred_check_branch
          %143 = sbr.rel (%p141) target = $region32
        $region31: #{tpu_custom_call.1} parent=27 // pred_region
          %144 = dma.done [#allocation5], 16
        $region32: #{tpu_custom_call.1} parent=27 // pred_fallthru
          _
        %s145 = sand.u32 %s49, 1
        %s146 = scalar_lea.sflag [#allocation3], %s145
        %s147 = sand.u32 %s49, 1
        %s148 = smul.addr %s147, 8
        %s149 = scalar_lea.vmem [#allocation6], %s148
        // Predicated region
        $region33: #{tpu_custom_call.1} parent=27 // pred_check
          %p150 = pneg %p62
        $region34: #{tpu_custom_call.1} parent=27 // pred_check_branch
          %152 = sbr.rel (%p150) target = $region36
        $region35: #{tpu_custom_call.1} parent=27 // pred_region
          %153 = dma.done %s146, 128
        $region36: #{tpu_custom_call.1} parent=27 // pred_fallthru
          _
        %154 = sfence
        %p155 = pneg %p36
        %p156 = pneg %p33
        %s157 = sand.u32 %s49, 1
        %s158 = scalar_lea.sflag [#allocation3], %s157
        %s159 = sand.u32 %s49, 1
        %s160 = smul.addr %s159, 8
        %s161 = scalar_lea.vmem [#allocation6], %s160
        %p162 = pneg %p62
        %p163 = pneg %p59
        %p164 = pneg %p88
        %p165 = pneg %p85
        %s166 = sand.u32 %s75, 1
        %s167 = scalar_lea.sflag [#allocation4], %s166
        %s168 = sand.u32 %s75, 1
        %s169 = smul.addr %s168, 8
        %s170 = scalar_lea.vmem [#allocation7], %s169
        %v171 = vld [vmem:[%s149] sm:$0xff]
        %v172 = vmax.f32 %v171, 0.0
        %v173 = vmul.f32 %v172, 1.2515645
        %v174 = vmul.f32 %v172, 1.858736
        %v175 = vmul.f32 %v172, 5.4054055
        %s176 = sld [smem:[#allocation2]]
        %v177 = vmin.f32 %v173, 1.0
        %v178 = vround.ne.pseudo %v177
        %v179 = vstv %s176
        %v180 = vmul.f32 %v178, %v179
        %s181 = sld [smem:[#allocation2 + $0x1]]
        %v182 = vmin.f32 %v174, 3.0
        %v183 = vround.ne.pseudo %v182
        %v184 = vstv %s181
        %v185 = vmul.f32 %v183, %v184
        %v186 = vadd.f32 %v180, %v185
        %s187 = sld [smem:[#allocation2 + $0x2]]
        %v188 = vmin.f32 %v175, 15.0
        %v189 = vround.ne.pseudo %v188
        %v190 = vstv %s187
        %v191 = vmul.f32 %v189, %v190
        %v192 = vadd.f32 %v186, %v191
        %193 = vst [vmem:[%s170] sm:$0xff] %v192
        %s194 = sand.u32 %s75, 1
        %s195 = scalar_lea.sflag [#allocation4], %s194
        %s196 = sand.u32 %s75, 1
        %s197 = smul.addr %s196, 8
        %s198 = scalar_lea.vmem [#allocation7], %s197
        // Predicated region
        $region37: #{tpu_custom_call.1} parent=27 // pred_check
          %p199 = pneg %p85
        $region38: #{tpu_custom_call.1} parent=27 // pred_check_branch
          %201 = sbr.rel (%p199) target = $region40
        $region39: #{tpu_custom_call.1} parent=27 // pred_region
          %s203 = ssub.s32 128, 128
          %204 = vsyncadd %s195, %s203
          %s205 = smul.addr %s20, 128
          %s206 = scalar_lea.hbm %s2, %s205
          %s208 = sshll.u32 %s198, 4
          %s209 = int_to_ptr.vmem [resolvable:$true] %s208
          %211 = dma.vmem_to_hbm [thread:$0]  %s209, 128, %s206, %s195
        $region40: #{tpu_custom_call.1} parent=27 // pred_fallthru
          _
      $region28: #{tpu_custom_call.1} parent=5 // pred_fallthru
        _
      %p212 = scmp.le.s32.totalorder 2, %s15
      // Predicated region
      $region41: #{tpu_custom_call.1} parent=5 // pred_check
        %p213 = pneg %p212
      $region42: #{tpu_custom_call.1} parent=5 // pred_check_branch
        %215 = sbr.rel (%p213) target = $region44
      $region43: #{tpu_custom_call.1} parent=5 // pred_region
        %s216 = ssub.s32 %s15, 2
        // Predicated region
        $region45: #{tpu_custom_call.1} parent=43 // pred_check
          %p217 = pneg %p91
        $region46: #{tpu_custom_call.1} parent=43 // pred_check_branch
          %219 = sbr.rel (%p217) target = $region48
        $region47: #{tpu_custom_call.1} parent=43 // pred_region
          %s220 = sand.u32 %s76, 1
          %s221 = scalar_lea.sflag [#allocation4], %s220
          %s222 = sand.u32 %s76, 1
          %s223 = smul.addr %s222, 8
          %s224 = scalar_lea.vmem [#allocation7], %s223
          %225 = dma.done %s221, 128
        $region48: #{tpu_custom_call.1} parent=43 // pred_fallthru
          _
      $region44: #{tpu_custom_call.1} parent=5 // pred_fallthru
        _
    $region6: #{tpu_custom_call.1} parent=1 // loop_footer
      %s19 = sadd.s32 1, %s15
    $region7: #{tpu_custom_call.1} parent=1 // loop_footer_branch
      %14 = sbr.rel target = $region3
    $region8: #{tpu_custom_call.1} parent=1 // loop_exit
      _
    %226 = vsyncpa [#allocation3], 1
    %s227 = scalar_lea.sflag [#allocation3], 1
    %228 = vsyncpa %s227, 1
    %229 = vsyncpa [#allocation4], 1
    %s230 = scalar_lea.sflag [#allocation4], 1
    %231 = vsyncpa %s230, 1
    %232 = vsyncpa [#allocation5], 1
    %s233 = scalar_lea.sflag [#allocation5], 1
    %234 = vsyncpa %s233, 1

</llo_original>
